<compile_context>
chip_gen: v7x
topology: tpu7x:2x2x1
jax: 0.10.0
libtpu: 0.0.40
codegen_flags: <defaults>
</compile_context>

<pallas_src>
import functools

import jax
import jax.numpy as jnp
from jax.experimental import pallas as pl
from jax.experimental.pallas import tpu as pltpu


def _round_up(x, m):
    return ((x + m - 1) // m) * m


def _sf_mlp_kernel(x_ref, w1_ref, b1_ref, w2_ref, b2_ref, w3_ref, b3_ref, o_ref):
    """One batch tile: fused 2-layer MLP + all successor-feature heads.

    x/w* are bf16 (MXU-native), accumulation / bias / ReLU in f32 (VPU).
    """
    x = x_ref[...]                                                      # (TM, S) bf16
    h1 = jnp.dot(x, w1_ref[...], preferred_element_type=jnp.float32)    # f32 accum
    h1 = jnp.maximum(h1 + b1_ref[...], 0.0).astype(jnp.bfloat16)
    h2 = jnp.dot(h1, w2_ref[...], preferred_element_type=jnp.float32)
    h2 = jnp.maximum(h2 + b2_ref[...], 0.0).astype(jnp.bfloat16)
    out = jnp.dot(h2, w3_ref[...], preferred_element_type=jnp.float32)
    o_ref[...] = (out + b3_ref[...]).astype(o_ref.dtype)                # (TM, A*R)


def prepare_params(w1, b1, w2, b2, head_w, head_b):
    """One-time parameter repacking (hoisted out of the hot path).

    w1: (hidden, state_dim), b1: (hidden,)      -- PyTorch nn.Linear layout
    w2: (hidden, hidden),    b2: (hidden,)
    head_w: (reward_dim, num_actions, hidden), head_b: (reward_dim, num_actions)

    Returns pre-transposed bf16 weights (x @ W form) and f32 biases, with the heads
    packed so output column a*reward_dim + r == head r, action a -- i.e. it already
    matches torch.stack(values, dim=-1).reshape(-1, A, R).
    """
    hidden, state_dim = w1.shape
    reward_dim, num_actions, hidden2 = head_w.shape
    assert w2.shape == (hidden, hidden) and hidden2 == hidden
    assert head_b.shape == (reward_dim, num_actions)
    w1_t = jnp.asarray(w1).T.astype(jnp.bfloat16)                      # (S, H)
    w2_t = jnp.asarray(w2).T.astype(jnp.bfloat16)                      # (H, H)
    w3_t = jnp.transpose(jnp.asarray(head_w), (2, 1, 0)).reshape(
        hidden, num_actions * reward_dim).astype(jnp.bfloat16)         # (H, A*R)
    b1_r = jnp.asarray(b1).reshape(1, hidden).astype(jnp.float32)
    b2_r = jnp.asarray(b2).reshape(1, hidden).astype(jnp.float32)
    b3_r = jnp.transpose(jnp.asarray(head_b), (1, 0)).reshape(
        1, num_actions * reward_dim).astype(jnp.float32)
    return (w1_t, b1_r, w2_t, b2_r, w3_t, b3_r)


@functools.partial(
    jax.jit,
    static_argnames=("num_actions", "reward_dim", "block_m", "min_pallas_batch"),
)
def successor_feature_forward(x, params, *, num_actions, reward_dim,
                              block_m=2048, min_pallas_batch=256):
    """x: (..., state_dim). Returns (-1, num_actions, reward_dim)."""
    w1_t, b1, w2_t, b2, w3_t, b3 = params
    state_dim, hidden = w1_t.shape
    out_dim = num_actions * reward_dim
    assert w3_t.shape == (hidden, out_dim) and b3.shape == (1, out_dim)
    assert x.shape[-1] == state_dim

    out_dtype = x.dtype
    x2d = x.reshape((-1, state_dim))
    B = x2d.shape[0]
    xb = x2d.astype(jnp.bfloat16)   # bf16 MXU operands; halves x DMA / VMEM bytes

    # --- tiny-batch fallback: fixed pallas_call cost dominates, let XLA fuse it ---
    if B < min_pallas_batch:
        h1 = jnp.maximum(jnp.dot(xb, w1_t, preferred_element_type=jnp.float32) + b1, 0.0)
        h2 = jnp.maximum(
            jnp.dot(h1.astype(jnp.bfloat16), w2_t, preferred_element_type=jnp.float32) + b2, 0.0)
        out = jnp.dot(h2.astype(jnp.bfloat16), w3_t, preferred_element_type=jnp.float32) + b3
        return out.astype(out_dtype).reshape((-1, num_actions, reward_dim))

    # --- batch tile: big (amortize ~0.35us/step), multiple of 8 sublanes, and
    #     guaranteed >= 2 grid steps whenever B > 8 so v7x's 2 TCs both get work ---
    tm = max(8, min(block_m, _round_up(pl.cdiv(B, 2), 8)))
    num_tiles = pl.cdiv(B, tm)
    Bp = num_tiles * tm
    if Bp != B:
        xb = jnp.pad(xb, ((0, Bp - B), (0, 0)))  # padded rows are garbage, sliced off below

    flops = 2 * Bp * (state_dim * hidden + hidden * hidden + hidden * out_dim)
    bytes_accessed = (
        xb.size * 2                                   # bf16 activations in
        + (w1_t.size + w2_t.size + w3_t.size) * 2     # bf16 weights
        + (b1.size + b2.size + b3.size) * 4           # f32 biases
        + Bp * out_dim * jnp.dtype(out_dtype).itemsize  # output
    )

    out = pl.pallas_call(
        _sf_mlp_kernel,
        out_shape=jax.ShapeDtypeStruct((Bp, out_dim), out_dtype),
        grid_spec=pltpu.PrefetchScalarGridSpec(
            num_scalar_prefetch=0,
            grid=(num_tiles,),
            in_specs=[
                pl.BlockSpec((tm, state_dim), lambda i: (i, 0)),      # x: batch-tiled
                pl.BlockSpec((state_dim, hidden), lambda i: (0, 0)),  # weights resident
                pl.BlockSpec((1, hidden), lambda i: (0, 0)),
                pl.BlockSpec((hidden, hidden), lambda i: (0, 0)),
                pl.BlockSpec((1, hidden), lambda i: (0, 0)),
                pl.BlockSpec((hidden, out_dim), lambda i: (0, 0)),
                pl.BlockSpec((1, out_dim), lambda i: (0, 0)),
            ],
            out_specs=pl.BlockSpec((tm, out_dim), lambda i: (i, 0)),
        ),
        compiler_params=pltpu.CompilerParams(
            # Batch tiles are independent -> shard across v7x's 2 TensorCores.
            dimension_semantics=("parallel",),
        ),
        cost_estimate=pl.CostEstimate(
            flops=flops, transcendentals=0, bytes_accessed=bytes_accessed),
    )(xb, w1_t, b1, w2_t, b2, w3_t, b3)

    if Bp != B:
        out = out[:B]
    # Column a*reward_dim + r already matches torch.stack(dim=-1) ordering.
    return out.reshape((-1, num_actions, reward_dim))


if __name__ == "__main__":
    # Small shapes consistent with the module.
    state_dim, hidden_dim, num_actions, reward_dim = 32, 64, 4, 3

    key = jax.random.PRNGKey(0)
    kx, k1, kb1, k2, kb2, kh, khb, kx2 = jax.random.split(key, 8)

    # Mimic nn.Linear default init: uniform(-1/sqrt(fan_in), 1/sqrt(fan_in)).
    bnd1 = 1.0 / (state_dim ** 0.5)
    w1 = jax.random.uniform(k1, (hidden_dim, state_dim), jnp.float32, -bnd1, bnd1)
    b1 = jax.random.uniform(kb1, (hidden_dim,), jnp.float32, -bnd1, bnd1)
    bnd2 = 1.0 / (hidden_dim ** 0.5)
    w2 = jax.random.uniform(k2, (hidden_dim, hidden_dim), jnp.float32, -bnd2, bnd2)
    b2 = jax.random.uniform(kb2, (hidden_dim,), jnp.float32, -bnd2, bnd2)
    head_w = jax.random.uniform(kh, (reward_dim, num_actions, hidden_dim), jnp.float32, -bnd2, bnd2)
    head_b = jax.random.uniform(khb, (reward_dim, num_actions), jnp.float32, -bnd2, bnd2)

    # One-time parameter repacking / bf16 cast (hoisted out of the hot path).
    params = prepare_params(w1, b1, w2, b2, head_w, head_b)

    # Pure-JAX f32 reference matching the PyTorch forward semantics.
    def torch_ref(xin):
        r_h1 = jnp.maximum(xin @ w1.T + b1, 0.0)
        r_h2 = jnp.maximum(r_h1 @ w2.T + b2, 0.0)
        vals = [r_h2 @ head_w[r].T + head_b[r] for r in range(reward_dim)]
        return jnp.stack(vals, axis=-1).reshape((-1, num_actions, reward_dim))

    # 1) Small-batch demo call: force the Pallas path so the kernel is exercised.
    x_small = jax.random.normal(kx, (8, state_dim), dtype=jnp.float32)
    out_small = jax.block_until_ready(successor_feature_forward(
        x_small, params, num_actions=num_actions, reward_dim=reward_dim,
        min_pallas_batch=0))
    ref_small = torch_ref(x_small)
    assert out_small.shape == (8, num_actions, reward_dim), out_small.shape
    assert jnp.allclose(out_small, ref_small, atol=3e-2, rtol=3e-2), \
        float(jnp.max(jnp.abs(out_small - ref_small)))

    # 2) Multi-tile call: exercises >=2 grid steps (v7x parallel axis) + tail padding.
    x_big = jax.random.normal(kx2, (200, state_dim), dtype=jnp.float32)
    out_big = jax.block_until_ready(successor_feature_forward(
        x_big, params, num_actions=num_actions, reward_dim=reward_dim,
        block_m=2048, min_pallas_batch=0))
    ref_big = torch_ref(x_big)
    assert out_big.shape == (200, num_actions, reward_dim), out_big.shape
    assert jnp.allclose(out_big, ref_big, atol=3e-2, rtol=3e-2), \
        float(jnp.max(jnp.abs(out_big - ref_big)))

    print("KERNEL_OK")
</pallas_src>

<mosaic_0001>
module attributes {stable_mosaic.version = 11 : i64} {
  func.func @_sf_mlp_kernel(%arg0: i32, %arg1: memref<8x32xbf16, #tpu.memory_space<vmem>>, %arg2: memref<32x64xbf16, #tpu.memory_space<vmem>>, %arg3: memref<1x64xf32, #tpu.memory_space<vmem>>, %arg4: memref<64x64xbf16, #tpu.memory_space<vmem>>, %arg5: memref<1x64xf32, #tpu.memory_space<vmem>>, %arg6: memref<64x12xbf16, #tpu.memory_space<vmem>>, %arg7: memref<1x12xf32, #tpu.memory_space<vmem>>, %arg8: memref<8x12xf32, #tpu.memory_space<vmem>>) attributes {dimension_semantics = [#tpu.dimension_semantics<parallel>], iteration_bounds = array<i64: 1>, scalar_prefetch = 0 : i64, scratch_operands = 0 : i64, tpu.core_type = #tpu.core_type<tc>, window_params = [{transform_indices = @transform_0, window_bounds = array<i64: 8, 32>}, {pipeline_mode = #tpu.pipeline_mode<synchronous>, transform_indices = @transform_1, window_bounds = array<i64: 32, 64>}, {pipeline_mode = #tpu.pipeline_mode<synchronous>, transform_indices = @transform_2, window_bounds = array<i64: 1, 64>}, {pipeline_mode = #tpu.pipeline_mode<synchronous>, transform_indices = @transform_3, window_bounds = array<i64: 64, 64>}, {pipeline_mode = #tpu.pipeline_mode<synchronous>, transform_indices = @transform_4, window_bounds = array<i64: 1, 64>}, {pipeline_mode = #tpu.pipeline_mode<synchronous>, transform_indices = @transform_5, window_bounds = array<i64: 64, 12>}, {pipeline_mode = #tpu.pipeline_mode<synchronous>, transform_indices = @transform_6, window_bounds = array<i64: 1, 12>}, {transform_indices = @transform_7, window_bounds = array<i64: 8, 12>}]} {
    %c0 = arith.constant 0 : index
    %c0_0 = arith.constant 0 : index
    %0 = vector.load %arg1[%c0, %c0_0] : memref<8x32xbf16, #tpu.memory_space<vmem>>, vector<8x32xbf16>
    %c0_1 = arith.constant 0 : index
    %c0_2 = arith.constant 0 : index
    %1 = vector.load %arg2[%c0_1, %c0_2] : memref<32x64xbf16, #tpu.memory_space<vmem>>, vector<32x64xbf16>
    %cst = arith.constant dense<0.000000e+00> : vector<8x64xf32>
    %2 = tpu.matmul %0, %1, %cst {dimension_numbers = #tpu.dot_dimension_numbers<[1], [0], [0], [1], [0, 0, 1, 1], [], []>} : vector<8x32xbf16>, vector<32x64xbf16>, vector<8x64xf32> -> vector<8x64xf32>
    %c0_3 = arith.constant 0 : index
    %c0_4 = arith.constant 0 : index
    %3 = vector.load %arg3[%c0_3, %c0_4] : memref<1x64xf32, #tpu.memory_space<vmem>>, vector<1x64xf32>
    %4 = vector.broadcast %3 : vector<1x64xf32> to vector<8x64xf32>
    %5 = arith.addf %2, %4 : vector<8x64xf32>
    %cst_5 = arith.constant 0.000000e+00 : f32
    %6 = vector.broadcast %cst_5 : f32 to vector<8x64xf32>
    %7 = arith.maximumf %5, %6 : vector<8x64xf32>
    %8 = arith.truncf %7 : vector<8x64xf32> to vector<8x64xbf16>
    %c0_6 = arith.constant 0 : index
    %c0_7 = arith.constant 0 : index
    %9 = vector.load %arg4[%c0_6, %c0_7] : memref<64x64xbf16, #tpu.memory_space<vmem>>, vector<64x64xbf16>
    %cst_8 = arith.constant dense<0.000000e+00> : vector<8x64xf32>
    %10 = tpu.matmul %8, %9, %cst_8 {dimension_numbers = #tpu.dot_dimension_numbers<[1], [0], [0], [1], [0, 0, 1, 1], [], []>} : vector<8x64xbf16>, vector<64x64xbf16>, vector<8x64xf32> -> vector<8x64xf32>
    %c0_9 = arith.constant 0 : index
    %c0_10 = arith.constant 0 : index
    %11 = vector.load %arg5[%c0_9, %c0_10] : memref<1x64xf32, #tpu.memory_space<vmem>>, vector<1x64xf32>
    %12 = vector.broadcast %11 : vector<1x64xf32> to vector<8x64xf32>
    %13 = arith.addf %10, %12 : vector<8x64xf32>
    %cst_11 = arith.constant 0.000000e+00 : f32
    %14 = vector.broadcast %cst_11 : f32 to vector<8x64xf32>
    %15 = arith.maximumf %13, %14 : vector<8x64xf32>
    %16 = arith.truncf %15 : vector<8x64xf32> to vector<8x64xbf16>
    %c0_12 = arith.constant 0 : index
    %c0_13 = arith.constant 0 : index
    %17 = vector.load %arg6[%c0_12, %c0_13] : memref<64x12xbf16, #tpu.memory_space<vmem>>, vector<64x12xbf16>
    %cst_14 = arith.constant dense<0.000000e+00> : vector<8x12xf32>
    %18 = tpu.matmul %16, %17, %cst_14 {dimension_numbers = #tpu.dot_dimension_numbers<[1], [0], [0], [1], [0, 0, 1, 1], [], []>} : vector<8x64xbf16>, vector<64x12xbf16>, vector<8x12xf32> -> vector<8x12xf32>
    %c0_15 = arith.constant 0 : index
    %c0_16 = arith.constant 0 : index
    %19 = vector.load %arg7[%c0_15, %c0_16] : memref<1x12xf32, #tpu.memory_space<vmem>>, vector<1x12xf32>
    %20 = vector.broadcast %19 : vector<1x12xf32> to vector<8x12xf32>
    %21 = arith.addf %18, %20 : vector<8x12xf32>
    %c0_17 = arith.constant 0 : index
    %c0_18 = arith.constant 0 : index
    %22 = vector.load %arg8[%c0_17, %c0_18] : memref<8x12xf32, #tpu.memory_space<vmem>>, vector<8x12xf32>
    tpu.vector_store %arg8[%c0_17, %c0_18], %21 {strides = array<i32>} : memref<8x12xf32, #tpu.memory_space<vmem>>, vector<8x12xf32>,
    return
  }
  func.func @transform_0(%arg0: i32) -> (i32, i32) {
    %c0_i32 = arith.constant 0 : i32
    %c0_i32_0 = arith.constant 0 : i32
    return %arg0, %c0_i32 : i32, i32
  }
  func.func @transform_1(%arg0: i32) -> (i32, i32) {
    %c0_i32 = arith.constant 0 : i32
    %c0_i32_0 = arith.constant 0 : i32
    %c0_i32_1 = arith.constant 0 : i32
    return %c0_i32, %c0_i32_0 : i32, i32
  }
  func.func @transform_2(%arg0: i32) -> (i32, i32) {
    %c0_i32 = arith.constant 0 : i32
    %c0_i32_0 = arith.constant 0 : i32
    %c0_i32_1 = arith.constant 0 : i32
    return %c0_i32, %c0_i32_0 : i32, i32
  }
  func.func @transform_3(%arg0: i32) -> (i32, i32) {
    %c0_i32 = arith.constant 0 : i32
    %c0_i32_0 = arith.constant 0 : i32
    %c0_i32_1 = arith.constant 0 : i32
    return %c0_i32, %c0_i32_0 : i32, i32
  }
  func.func @transform_4(%arg0: i32) -> (i32, i32) {
    %c0_i32 = arith.constant 0 : i32
    %c0_i32_0 = arith.constant 0 : i32
    %c0_i32_1 = arith.constant 0 : i32
    return %c0_i32, %c0_i32_0 : i32, i32
  }
  func.func @transform_5(%arg0: i32) -> (i32, i32) {
    %c0_i32 = arith.constant 0 : i32
    %c0_i32_0 = arith.constant 0 : i32
    %c0_i32_1 = arith.constant 0 : i32
    return %c0_i32, %c0_i32_0 : i32, i32
  }
  func.func @transform_6(%arg0: i32) -> (i32, i32) {
    %c0_i32 = arith.constant 0 : i32
    %c0_i32_0 = arith.constant 0 : i32
    %c0_i32_1 = arith.constant 0 : i32
    return %c0_i32, %c0_i32_0 : i32, i32
  }
  func.func @transform_7(%arg0: i32) -> (i32, i32) {
    %c0_i32 = arith.constant 0 : i32
    %c0_i32_0 = arith.constant 0 : i32
    return %arg0, %c0_i32 : i32, i32
  }
}

</mosaic_0001>

<llo_original>
// kernel: successor_feature_forward.1
$region0: #{successor_feature_forward.1}
  #allocation0 [shape = 'u32[]', space=smem, size = 0x4, offset = 0x4, fixed_abs, tag = 'smem constant byte address 0x4 - core index']
  #allocation1 [shape = 'u32[144,128]{1,0:T(1,128)}', space=vmem, size = 0x12000, scoped, tag = 'internal scratch']
  %s0 = inlined_call_operand.vmem [shape: bf16[8,32], index: 0, kind: input, shape index: {}]
  %s1 = inlined_call_operand.vmem [shape: bf16[32,64], index: 1, kind: input, shape index: {}]
  %s2 = inlined_call_operand.vmem [shape: f32[1,64], index: 2, kind: input, shape index: {}]
  %s3 = inlined_call_operand.vmem [shape: bf16[64,64], index: 3, kind: input, shape index: {}]
  %s4 = inlined_call_operand.vmem [shape: f32[1,64], index: 4, kind: input, shape index: {}]
  %s5 = inlined_call_operand.vmem [shape: bf16[64,12], index: 5, kind: input, shape index: {}]
  %s6 = inlined_call_operand.vmem [shape: f32[1,12], index: 6, kind: input, shape index: {}]
  %s7 = inlined_call_operand.vmem [shape: f32[8,12], index: 7, kind: output, shape index: {}]
  %s8 = sld [smem:[#allocation0]]
  $region38: #{successor_feature_forward.1} parent=0
    _
  %s10 = ssub.s32 1, %s8
  %s11 = scalar_select 0, %s10, %s8
  // Predicated region
  $region2: #{successor_feature_forward.1} parent=0 // pred_check
    _
  $region3: #{successor_feature_forward.1} parent=0 // pred_check_branch
    %13 = sbr.rel (0) target = $region5
  $region4: #{successor_feature_forward.1} parent=0 // pred_region
    _
  $region5: #{successor_feature_forward.1} parent=0 // pred_fallthru
    _
  // Predicated region
  $region6: #{successor_feature_forward.1} parent=0 // pred_check
    _
  $region7: #{successor_feature_forward.1} parent=0 // pred_check_branch
    %15 = sbr.rel (0) target = $region9
  $region8: #{successor_feature_forward.1} parent=0 // pred_region
    _
  $region9: #{successor_feature_forward.1} parent=0 // pred_fallthru
    _
  // Predicated region
  $region10: #{successor_feature_forward.1} parent=0 // pred_check
    _
  $region11: #{successor_feature_forward.1} parent=0 // pred_check_branch
    %17 = sbr.rel (0) target = $region13
  $region12: #{successor_feature_forward.1} parent=0 // pred_region
    _
  $region13: #{successor_feature_forward.1} parent=0 // pred_fallthru
    _
  // Predicated region
  $region14: #{successor_feature_forward.1} parent=0 // pred_check
    _
  $region15: #{successor_feature_forward.1} parent=0 // pred_check_branch
    %19 = sbr.rel (0) target = $region17
  $region16: #{successor_feature_forward.1} parent=0 // pred_region
    _
  $region17: #{successor_feature_forward.1} parent=0 // pred_fallthru
    _
  // Predicated region
  $region18: #{successor_feature_forward.1} parent=0 // pred_check
    _
  $region19: #{successor_feature_forward.1} parent=0 // pred_check_branch
    %21 = sbr.rel (0) target = $region21
  $region20: #{successor_feature_forward.1} parent=0 // pred_region
    _
  $region21: #{successor_feature_forward.1} parent=0 // pred_fallthru
    _
  // Predicated region
  $region22: #{successor_feature_forward.1} parent=0 // pred_check
    _
  $region23: #{successor_feature_forward.1} parent=0 // pred_check_branch
    %23 = sbr.rel (0) target = $region25
  $region24: #{successor_feature_forward.1} parent=0 // pred_region
    _
  $region25: #{successor_feature_forward.1} parent=0 // pred_fallthru
    _
  // Predicated region
  $region26: #{successor_feature_forward.1} parent=0 // pred_check
    _
  $region27: #{successor_feature_forward.1} parent=0 // pred_check_branch
    %25 = sbr.rel (0) target = $region29
  $region28: #{successor_feature_forward.1} parent=0 // pred_region
    _
  $region29: #{successor_feature_forward.1} parent=0 // pred_fallthru
    _
  %v27 = vld [vmem:[%s0] sm:$0xf]
  %v28 = vld [vmem:[%s1] sm:$0xf]
  %v29 = vld [vmem:[%s1 + $0x4] sm:$0xf]
  %v30 = vld [vmem:[%s1 + $0x8] sm:$0xf]
  %v31 = vld [vmem:[%s1 + $0xc] sm:$0xf]
  %v32 = vld [vmem:[%s2] sm:$0x1]
  %v34 = vlaneseq
  %v35 = vshrl.u32 %v34, 7
  %v36 = vsub.s32 0, %v35
  %v37 = vrot.slane %v32, %v36
  %v43 = vunpack.c.l.b16 %v28
  %v44 = vunpack.c.l.b16 %v29
  %v45 = vunpack.c.l.b16 %v30
  %v46 = vunpack.c.l.b16 %v31
  %v47 = vpack.c.b16 %v44, %v43
  %v48 = vpack.c.b16 %v46, %v45
  %vm51 = vcmask 261120
  %v53 = vsel %vm51, %v27, 0
  %55 = vmatprep.subr.bf16.mxu0 0
  %56 = vmatpush1.bf16.msra.mxu0 %v47
  %57 = vmatprep.subr.bf16.mxu0 0
  %58 = vmatpush1.bf16.msra.mxu0 %v48
  %59 = vmatprep.subr.bf16.mxu0 0
  %60 = vmatpush1.bf16.msra.mxu0 0
  %61 = vmatprep.subr.bf16.mxu0 0
  %62 = vmatpush1.bf16.msra.mxu0 0
  %63 = vmatprep.subr.bf16.mxu0 0
  %64 = vmatpush1.bf16.msra.mxu0 0
  %65 = vmatprep.subr.bf16.mxu0 0
  %66 = vmatpush1.bf16.msra.mxu0 0
  %67 = vmatprep.subr.bf16.mxu0 0
  %68 = vmatpush1.bf16.msra.mxu0 0
  %69 = vmatprep.subr.bf16.mxu0 0
  %70 = vmatpush1.bf16.msra.mxu0 0
  %71 = vmatprep.subr.bf16.mxu0 0
  %72 = vmatpush1.bf16.msra.mxu0 0
  %73 = vmatprep.subr.bf16.mxu0 0
  %74 = vmatpush1.bf16.msra.mxu0 0
  %75 = vmatprep.subr.bf16.mxu0 0
  %76 = vmatpush1.bf16.msra.mxu0 0
  %77 = vmatprep.subr.bf16.mxu0 0
  %78 = vmatpush1.bf16.msra.mxu0 0
  %79 = vmatprep.subr.bf16.mxu0 0
  %80 = vmatpush1.bf16.msra.mxu0 0
  %81 = vmatprep.subr.bf16.mxu0 0
  %82 = vmatpush1.bf16.msra.mxu0 0
  %83 = vmatprep.subr.bf16.mxu0 0
  %84 = vmatpush1.bf16.msra.mxu0 0
  %85 = vmatprep.subr.bf16.mxu0 0
  %86 = vmatpush1.bf16.msra.mxu0 0
  %87 = vmatprep.mubr.bf16.mxu0 0
  %88 = vmatmul.mubr.bf16.gmra.mrb[0].mxu0 %v53
  %v89 = vpop.f32.mrb[0].mxu0
  %v90 = vadd.f32 %v37, %v89
  %v91 = vpop.f32.mrb[0].mxu0
  %v92 = vpop.f32.mrb[0].mxu0
  %v93 = vpop.f32.mrb[0].mxu0
  %94 = vdwg.mxu0
  %v95 = vmax.f32 %v90, 0.0
  %v96 = vpack.c.bf16 %v95, %v95
  %v97 = vld [vmem:[%s3] sm:$0xf]
  %v98 = vld [vmem:[%s3 + $0x4] sm:$0xf]
  %v99 = vld [vmem:[%s3 + $0x8] sm:$0xf]
  %v100 = vld [vmem:[%s3 + $0xc] sm:$0xf]
  %v101 = vld [vmem:[%s3 + $0x10] sm:$0xf]
  %v102 = vld [vmem:[%s3 + $0x14] sm:$0xf]
  %v103 = vld [vmem:[%s3 + $0x18] sm:$0xf]
  %v104 = vld [vmem:[%s3 + $0x1c] sm:$0xf]
  %v105 = vld [vmem:[%s4] sm:$0x1]
  %v107 = vlaneseq
  %v108 = vshrl.u32 %v107, 7
  %v109 = vsub.s32 0, %v108
  %v110 = vrot.slane %v105, %v109
  %v120 = vunpack.c.l.b16 %v97
  %v121 = vunpack.c.l.b16 %v98
  %v122 = vunpack.c.l.b16 %v99
  %v123 = vunpack.c.l.b16 %v100
  %v124 = vunpack.c.l.b16 %v101
  %v125 = vunpack.c.l.b16 %v102
  %v126 = vunpack.c.l.b16 %v103
  %v127 = vunpack.c.l.b16 %v104
  %v128 = vpack.c.b16 %v121, %v120
  %v129 = vpack.c.b16 %v123, %v122
  %v130 = vpack.c.b16 %v125, %v124
  %v131 = vpack.c.b16 %v127, %v126
  %vm136 = vcmask 523264
  %v138 = vsel %vm136, %v96, 0
  %140 = vmatprep.subr.bf16.mxu0 0
  %141 = vmatpush1.bf16.msra.mxu0 %v128
  %142 = vmatprep.subr.bf16.mxu0 0
  %143 = vmatpush1.bf16.msra.mxu0 %v129
  %144 = vmatprep.subr.bf16.mxu0 0
  %145 = vmatpush1.bf16.msra.mxu0 %v130
  %146 = vmatprep.subr.bf16.mxu0 0
  %147 = vmatpush1.bf16.msra.mxu0 %v131
  %148 = vmatprep.subr.bf16.mxu0 0
  %149 = vmatpush1.bf16.msra.mxu0 0
  %150 = vmatprep.subr.bf16.mxu0 0
  %151 = vmatpush1.bf16.msra.mxu0 0
  %152 = vmatprep.subr.bf16.mxu0 0
  %153 = vmatpush1.bf16.msra.mxu0 0
  %154 = vmatprep.subr.bf16.mxu0 0
  %155 = vmatpush1.bf16.msra.mxu0 0
  %156 = vmatprep.subr.bf16.mxu0 0
  %157 = vmatpush1.bf16.msra.mxu0 0
  %158 = vmatprep.subr.bf16.mxu0 0
  %159 = vmatpush1.bf16.msra.mxu0 0
  %160 = vmatprep.subr.bf16.mxu0 0
  %161 = vmatpush1.bf16.msra.mxu0 0
  %162 = vmatprep.subr.bf16.mxu0 0
  %163 = vmatpush1.bf16.msra.mxu0 0
  %164 = vmatprep.subr.bf16.mxu0 0
  %165 = vmatpush1.bf16.msra.mxu0 0
  %166 = vmatprep.subr.bf16.mxu0 0
  %167 = vmatpush1.bf16.msra.mxu0 0
  %168 = vmatprep.subr.bf16.mxu0 0
  %169 = vmatpush1.bf16.msra.mxu0 0
  %170 = vmatprep.subr.bf16.mxu0 0
  %171 = vmatpush1.bf16.msra.mxu0 0
  %172 = vmatprep.mubr.bf16.mxu0 0
  %173 = vmatmul.mubr.bf16.gmra.mrb[0].mxu0 %v138
  %v174 = vpop.f32.mrb[0].mxu0
  %v175 = vadd.f32 %v110, %v174
  %v176 = vpop.f32.mrb[0].mxu0
  %v177 = vpop.f32.mrb[0].mxu0
  %v178 = vpop.f32.mrb[0].mxu0
  %179 = vdwg.mxu0
  %v180 = vmax.f32 %v175, 0.0
  %v181 = vpack.c.bf16 %v180, %v180
  %v182 = vld [vmem:[%s5] sm:$0xf]
  %v183 = vld [vmem:[%s5 + $0x4] sm:$0xf]
  %v184 = vld [vmem:[%s5 + $0x8] sm:$0xf]
  %v185 = vld [vmem:[%s5 + $0xc] sm:$0xf]
  %v186 = vld [vmem:[%s5 + $0x10] sm:$0xf]
  %v187 = vld [vmem:[%s5 + $0x14] sm:$0xf]
  %v188 = vld [vmem:[%s5 + $0x18] sm:$0xf]
  %v189 = vld [vmem:[%s5 + $0x1c] sm:$0xf]
  %v190 = vld [vmem:[%s6] sm:$0x1]
  %v192 = vlaneseq
  %v193 = vshrl.u32 %v192, 7
  %v194 = vsub.s32 0, %v193
  %v195 = vrot.slane %v190, %v194
  %v205 = vunpack.c.l.b16 %v182
  %v206 = vunpack.c.l.b16 %v183
  %v207 = vunpack.c.l.b16 %v184
  %v208 = vunpack.c.l.b16 %v185
  %v209 = vunpack.c.l.b16 %v186
  %v210 = vunpack.c.l.b16 %v187
  %v211 = vunpack.c.l.b16 %v188
  %v212 = vunpack.c.l.b16 %v189
  %v213 = vpack.c.b16 %v206, %v205
  %v214 = vpack.c.b16 %v208, %v207
  %v215 = vpack.c.b16 %v210, %v209
  %v216 = vpack.c.b16 %v212, %v211
  %v222 = vsel %vm136, %v181, 0
  %224 = vmatprep.subr.bf16.mxu0 0
  %225 = vmatpush1.bf16.msra.mxu0 %v213
  %226 = vmatprep.subr.bf16.mxu0 0
  %227 = vmatpush1.bf16.msra.mxu0 %v214
  %228 = vmatprep.subr.bf16.mxu0 0
  %229 = vmatpush1.bf16.msra.mxu0 %v215
  %230 = vmatprep.subr.bf16.mxu0 0
  %231 = vmatpush1.bf16.msra.mxu0 %v216
  %232 = vmatprep.subr.bf16.mxu0 0
  %233 = vmatpush1.bf16.msra.mxu0 0
  %234 = vmatprep.subr.bf16.mxu0 0
  %235 = vmatpush1.bf16.msra.mxu0 0
  %236 = vmatprep.subr.bf16.mxu0 0
  %237 = vmatpush1.bf16.msra.mxu0 0
  %238 = vmatprep.subr.bf16.mxu0 0
  %239 = vmatpush1.bf16.msra.mxu0 0
  %240 = vmatprep.subr.bf16.mxu0 0
  %241 = vmatpush1.bf16.msra.mxu0 0
  %242 = vmatprep.subr.bf16.mxu0 0
  %243 = vmatpush1.bf16.msra.mxu0 0
  %244 = vmatprep.subr.bf16.mxu0 0
  %245 = vmatpush1.bf16.msra.mxu0 0
  %246 = vmatprep.subr.bf16.mxu0 0
  %247 = vmatpush1.bf16.msra.mxu0 0
  %248 = vmatprep.subr.bf16.mxu0 0
  %249 = vmatpush1.bf16.msra.mxu0 0
  %250 = vmatprep.subr.bf16.mxu0 0
  %251 = vmatpush1.bf16.msra.mxu0 0
  %252 = vmatprep.subr.bf16.mxu0 0
  %253 = vmatpush1.bf16.msra.mxu0 0
  %254 = vmatprep.subr.bf16.mxu0 0
  %255 = vmatpush1.bf16.msra.mxu0 0
  %256 = vmatprep.mubr.bf16.mxu0 0
  %257 = vmatmul.mubr.bf16.gmra.mrb[0].mxu0 %v222
  %v258 = vpop.f32.mrb[0].mxu0
  %v259 = vadd.f32 %v195, %v258
  %v260 = vpop.f32.mrb[0].mxu0
  %v261 = vpop.f32.mrb[0].mxu0
  %v262 = vpop.f32.mrb[0].mxu0
  %263 = vdwg.mxu0
  %vm264 = vcmask 97280
  %265 = vst.msk [vmem:[%s7] sm:$0xff] %vm264, %v259
  // Predicated region
  $region30: #{successor_feature_forward.1} parent=0 // pred_check
    _
  $region31: #{successor_feature_forward.1} parent=0 // pred_check_branch
    %267 = sbr.rel (0) target = $region33
  $region32: #{successor_feature_forward.1} parent=0 // pred_region
    _
  $region33: #{successor_feature_forward.1} parent=0 // pred_fallthru
    _
  // Predicated region
  $region34: #{successor_feature_forward.1} parent=0 // pred_check
    _
  $region35: #{successor_feature_forward.1} parent=0 // pred_check_branch
    %269 = sbr.rel (0) target = $region37
  $region36: #{successor_feature_forward.1} parent=0 // pred_region
    _
  $region37: #{successor_feature_forward.1} parent=0 // pred_fallthru
    _

</llo_original>
